<compile_context>
chip_gen: v7x
topology: tpu7x:2x2x1
jax: 0.10.0
libtpu: 0.0.40
codegen_flags: <defaults>
</compile_context>

<pallas_src>
import functools
import math

import jax
import jax.numpy as jnp
import numpy as np
from jax import lax
from jax.experimental import pallas as pl
from jax.experimental.pallas import tpu as pltpu


# ----------------------------------------------------------------------------- kernel

def _arcmargin_kernel(label_ref, x_ref, w_ref, o_ref, *,
                      scale, cos_m, sin_m, th, mm, ls_eps, easy_margin,
                      out_features, tile_c, class_axis, normalize_w, mxu_dtype):
    # x_ref: (tb, F) raw input, w_ref: (tc, F), label_ref: (tb, 1) int32, o_ref: (tb, tc)
    x = x_ref[...]

    if normalize_w:
        # n_b == 1 path: the weight is streamed from HBM exactly once, raw; normalize
        # each tile here (row scale on the weight tile, then cast for the MXU).
        wf = w_ref[...].astype(jnp.float32)
        w_inv = lax.rsqrt(jnp.maximum(jnp.sum(wf * wf, axis=-1, keepdims=True), 1e-24))
        w_mxu = (wf * w_inv).astype(mxu_dtype)
    else:
        # Batch-tiled path: the weight was pre-normalized (and pre-cast to the MXU
        # dtype) in the wrapper.  With the class-outer grid it stays resident across
        # the inner batch steps, so this dominant HBM stream is read exactly once.
        w_mxu = w_ref[...]

    # raw[b, c] = sum_f x[b, f] * wn[c, f]; contraction on the LAST dims of BOTH
    # operands: no transpose materialization, f32 accumulation on the MXU.
    raw = lax.dot_general(
        x.astype(mxu_dtype), w_mxu,
        dimension_numbers=(((1,), (1,)), ((), ())),
        preferred_element_type=jnp.float32)

    # Normalize x AFTER the matmul: a (tb, 1) row scale on the (tb, tc) output tile
    # replaces a normalized+cast (tb, F) temporary.
    # F.normalize(dim=1, eps=1e-12): v / max(||v||, 1e-12) == v * rsqrt(max(||v||^2, 1e-24)).
    xf = x.astype(jnp.float32)
    x_inv = lax.rsqrt(jnp.maximum(jnp.sum(xf * xf, axis=-1, keepdims=True), 1e-24))
    cosine = raw * x_inv

    # ArcFace margin (clamp guards against |cosine| exceeding 1 by a rounding ulp).
    sine = jnp.sqrt(jnp.maximum(1.0 - cosine * cosine, 0.0))
    phi = cosine * cos_m - sine * sin_m
    if easy_margin:
        phi = jnp.where(cosine > 0.0, phi, cosine)
    else:
        phi = jnp.where(cosine > th, phi, cosine - mm)

    # one-hot(label) restricted to this class tile.
    col0 = pl.program_id(class_axis) * tile_c
    col_ids = lax.broadcasted_iota(jnp.int32, cosine.shape, 1) + col0
    hit = col_ids == label_ref[...]            # (tb, 1) broadcasts against (tb, tc)

    if ls_eps > 0.0:
        one_hot = (1.0 - ls_eps) * hit.astype(jnp.float32) + ls_eps / out_features
        out = (one_hot * phi + (1.0 - one_hot) * cosine) * scale
    else:
        # No label smoothing: a straight select avoids the int->float cast,
        # two multiplies and an add per output element.
        out = jnp.where(hit, phi, cosine) * scale

    o_ref[...] = out.astype(o_ref.dtype)


# ----------------------------------------------------------------------------- tiling

def _vmem_budget():
    """Return (tile budget, physical VMEM capacity) in bytes for this TPU generation."""
    try:
        cap = int(getattr(pltpu.get_tpu_info(), "vmem_capacity_bytes", 64 << 20))
    except Exception:
        cap = 64 << 20                           # conservative default: v7x (64 MiB / TC)
    budget = min(max(cap - (36 << 20), 24 << 20), 96 << 20)   # ~92 MiB on 128-MiB parts, ~28 MiB on v7x
    budget = min(budget, int(cap * 0.75))        # never budget more than ~3/4 of VMEM
    return budget, cap


def _tile_bytes(tb, tc, f, mxu_bytes, out_bytes):
    """Worst-case per-step VMEM footprint: double-buffered pipeline tiles plus
    in-kernel temporaries (mxu-dtype casts of x/w, normalized f32 weight copy and
    ~3 f32 (tb, tc) tiles for cosine/sine/phi)."""
    pipeline = 2 * (4 * tb * f + 4 * tc * f + out_bytes * tb * tc + 4 * tb)
    temps = mxu_bytes * (tb * f + tc * f) + 4 * tc * f + 3 * 4 * tb * tc
    return pipeline + temps


def _class_tile_candidates(C):
    """Valid class tiles: multiples of 128 that divide C, plus C itself."""
    cands = {C}
    t = 128
    while t < C:
        if C % t == 0:
            cands.add(t)
        t += 128
    return sorted(cands)


def _batch_tile_candidates(B):
    """Valid batch tiles: multiples of 8 that divide B, plus B itself."""
    cands = {B}
    t = 8
    while t < B:
        if B % t == 0:
            cands.add(t)
        t += 8
    return sorted(cands)


# ----------------------------------------------------------------------------- wrapper

def arc_margin_product(x, weight, label, *, scale=30.0, margin=0.5,
                       easy_margin=False, ls_eps=0.0,
                       tile_b=None, tile_c=None,
                       mxu_dtype=jnp.bfloat16, out_dtype=jnp.float32):
    """ArcFace head forward.  mxu_dtype=jnp.bfloat16 (default) is the fast path
    (f32 accumulation); mxu_dtype=jnp.float32 gives exact parity with the PyTorch
    module but is ~3x slower on the MXU (bf16x3 passes)."""
    B, F = x.shape
    C, F2 = weight.shape
    assert F == F2, "input feature dim must match weight in_features"

    mxu_bytes = jnp.dtype(mxu_dtype).itemsize
    out_bytes = jnp.dtype(out_dtype).itemsize
    budget, vmem_cap = _vmem_budget()

    def fits(tb, tc):
        return _tile_bytes(tb, tc, F, mxu_bytes, out_bytes) <= budget

    user_tiles = tile_b is not None or tile_c is not None
    ccands = _class_tile_candidates(C)

    # ---- class tile: wide & lane-dense (MXU N-fill, unmasked stores, few grid steps),
    #      sized per-generation from the VMEM budget.
    tile_c_auto = tile_c is None
    if tile_c_auto:
        desired = 2048 if budget >= (72 << 20) else (1024 if budget >= (48 << 20) else 512)
        desired = max(128, min(desired, budget // (16 * F)))   # keep weight double-buffer <= ~budget/2
        fitting = [t for t in ccands if t <= desired]
        tile_c = max(fitting) if fitting else min(ccands)
    if C % tile_c != 0:
        raise ValueError(f"tile_c={tile_c} must divide out_features={C}")
    if tile_c != C and tile_c % 128 != 0:
        raise ValueError(f"tile_c={tile_c} must be a multiple of 128 (or equal {C})")

    # ---- batch tile: as large as the VMEM budget allows; with bf16 MXU operands
    #      prefer multiples of 16 (full sublane packing).
    if tile_b is None:
        if fits(B, tile_c):
            tile_b = B
        else:
            bcands = _batch_tile_candidates(B)
            pick = None
            if mxu_bytes == 2:
                for t in reversed(bcands):
                    if t != B and t % 16 == 0 and fits(t, tile_c):
                        pick = t
                        break
            if pick is None:
                for t in reversed(bcands):
                    if t != B and fits(t, tile_c):
                        pick = t
                        break
            if pick is None:
                # The batch cannot be tiled (not a multiple of 8) or nothing fits:
                # keep the smallest valid batch tile and shrink the class tile instead
                # so we degrade gracefully instead of blowing past the VMEM limit.
                pick = min(bcands)
                if tile_c_auto:
                    fitting = [t for t in ccands if fits(pick, t)]
                    tile_c = max(fitting) if fitting else min(ccands)
            tile_b = pick
    if B % tile_b != 0:
        raise ValueError(f"tile_b={tile_b} must divide batch={B}")
    if tile_b != B and tile_b % 8 != 0:
        raise ValueError(f"tile_b={tile_b} must be a multiple of 8 (or equal {B})")

    # ---- guarantee >= 2 grid steps so both v7x TensorCores get work (the "parallel"
    #      axes are sharded across cores); costs one extra ~0.35us step on 1-TC chips.
    if not user_tiles and (B // tile_b) * (C // tile_c) == 1:
        if C % 256 == 0:
            tile_c = C // 2
        elif B % 16 == 0:
            tile_b = B // 2

    n_b = B // tile_b
    n_c = C // tile_c

    # ArcFace constants.
    cos_m = math.cos(margin)
    sin_m = math.sin(margin)
    th = math.cos(math.pi - margin)
    mm = math.sin(math.pi - margin) * margin

    label2d = label.astype(jnp.int32).reshape(B, 1)

    # Weight handling:
    #  * n_b == 1: streamed from HBM exactly once anyway -> keep it raw and normalize
    #    each tile in-kernel (no extra wrapper pass over C x F).
    #  * n_b > 1 : pre-normalize once in the wrapper and pre-cast to the MXU dtype so
    #    the dominant HBM stream is halved (bf16) and never re-normalized; the grid is
    #    swapped to class-OUTER / batch-INNER below so each weight tile is DMA'd once
    #    and stays resident across the inner batch steps.
    normalize_w_in_kernel = n_b == 1
    if normalize_w_in_kernel:
        w_in = weight
    else:
        wf = weight.astype(jnp.float32)
        wn = wf * lax.rsqrt(jnp.maximum(jnp.sum(wf * wf, axis=1, keepdims=True), 1e-24))
        w_in = wn.astype(mxu_dtype)

    if n_b == 1:
        # x resident over the inner class axis, weight streamed exactly once.
        grid = (n_b, n_c)
        class_axis = 1
        lbl_map = lambda i, j: (i, 0)
        x_map = lambda i, j: (i, 0)
        w_map = lambda i, j: (j, 0)
        o_map = lambda i, j: (i, j)
    else:
        # Batch tiled: class axis OUTER, batch axis INNER -> the weight block index
        # depends only on the outer index, so the weight tile stays resident (single
        # HBM pass) while the much smaller x tiles are streamed.
        grid = (n_c, n_b)
        class_axis = 0
        lbl_map = lambda j, i: (i, 0)
        x_map = lambda j, i: (i, 0)
        w_map = lambda j, i: (j, 0)
        o_map = lambda j, i: (i, j)

    kernel = functools.partial(
        _arcmargin_kernel,
        scale=float(scale), cos_m=cos_m, sin_m=sin_m, th=th, mm=mm,
        ls_eps=float(ls_eps), easy_margin=easy_margin,
        out_features=C, tile_c=tile_c, class_axis=class_axis,
        normalize_w=normalize_w_in_kernel, mxu_dtype=mxu_dtype)

    est = _tile_bytes(tile_b, tile_c, F, mxu_bytes, out_bytes)
    vmem_limit = int(min(max(est + (16 << 20), 32 << 20),
                         max(vmem_cap - (2 << 20), 32 << 20)))

    return pl.pallas_call(
        kernel,
        out_shape=jax.ShapeDtypeStruct((B, C), out_dtype),
        grid_spec=pltpu.PrefetchScalarGridSpec(
            num_scalar_prefetch=0,
            grid=grid,
            in_specs=[
                pl.BlockSpec((tile_b, 1), lbl_map),     # label
                pl.BlockSpec((tile_b, F), x_map),       # x (raw f32)
                pl.BlockSpec((tile_c, F), w_map),       # weight (raw f32 or prenorm bf16)
            ],
            out_specs=pl.BlockSpec((tile_b, tile_c), o_map),
        ),
        compiler_params=pltpu.CompilerParams(
            dimension_semantics=("parallel", "parallel"),
            vmem_limit_bytes=vmem_limit),
    )(label2d, x, w_in)


# ----------------------------------------------------------------------------- reference

def _reference(x, weight, label, *, scale=30.0, margin=0.5,
               easy_margin=False, ls_eps=0.0):
    """Pure-JAX f32 reference mirroring the PyTorch forward."""
    cos_m, sin_m = math.cos(margin), math.sin(margin)
    th = math.cos(math.pi - margin)
    mm = math.sin(math.pi - margin) * margin
    xn = x / jnp.maximum(jnp.linalg.norm(x, axis=1, keepdims=True), 1e-12)
    wn = weight / jnp.maximum(jnp.linalg.norm(weight, axis=1, keepdims=True), 1e-12)
    cosine = jnp.dot(xn, wn.T, preferred_element_type=jnp.float32)
    sine = jnp.sqrt(jnp.maximum(1.0 - cosine ** 2, 0.0))
    phi = cosine * cos_m - sine * sin_m
    if easy_margin:
        phi = jnp.where(cosine > 0, phi, cosine)
    else:
        phi = jnp.where(cosine > th, phi, cosine - mm)
    one_hot = jax.nn.one_hot(label, weight.shape[0], dtype=cosine.dtype)
    if ls_eps > 0:
        one_hot = (1 - ls_eps) * one_hot + ls_eps / weight.shape[0]
    return (one_hot * phi + (1.0 - one_hot) * cosine) * scale


# ----------------------------------------------------------------------------- test

if __name__ == "__main__":
    B, in_features, out_features = 16, 128, 256

    key = jax.random.PRNGKey(0)
    kx, kw, kl = jax.random.split(key, 3)

    x = jax.random.normal(kx, (B, in_features), dtype=jnp.float32)

    # Deterministic xavier_uniform_-style init for weight (out_features, in_features).
    limit = math.sqrt(6.0 / (in_features + out_features))
    weight = jax.random.uniform(kw, (out_features, in_features),
                                dtype=jnp.float32, minval=-limit, maxval=limit)

    label = jax.random.randint(kl, (B,), 0, out_features, dtype=jnp.int32)

    ref = _reference(x, weight, label, scale=30.0, margin=0.5,
                     easy_margin=False, ls_eps=0.0)

    # 1) Parity path: f32 MXU operands, auto tiling (single batch tile, in-kernel
    #    weight normalization).  Post-matmul x normalization moves the f32 rounding
    #    point slightly, hence the 1e-4-level tolerance instead of 1e-5.
    out = arc_margin_product(x, weight, label, scale=30.0, margin=0.5,
                             easy_margin=False, ls_eps=0.0,
                             mxu_dtype=jnp.float32)
    out = jax.block_until_ready(out)
    np.testing.assert_allclose(np.asarray(out), np.asarray(ref),
                               rtol=1e-4, atol=2e-4)

    # 2) Forced batch+class tiling: exercises the class-outer grid, the
    #    wrapper-pre-normalized resident-weight path and label smoothing.
    out2 = arc_margin_product(x, weight, label, scale=30.0, margin=0.5,
                              easy_margin=False, ls_eps=0.1,
                              mxu_dtype=jnp.float32, tile_b=8, tile_c=128)
    out2 = jax.block_until_ready(out2)
    ref2 = _reference(x, weight, label, scale=30.0, margin=0.5,
                      easy_margin=False, ls_eps=0.1)
    np.testing.assert_allclose(np.asarray(out2), np.asarray(ref2),
                               rtol=1e-4, atol=2e-4)

    # 3) Default fast path: bf16 MXU operands (f32 accumulation), compared against
    #    the f32 reference with a bf16-level tolerance.
    out3 = arc_margin_product(x, weight, label, scale=30.0, margin=0.5,
                              easy_margin=False, ls_eps=0.0)
    out3 = jax.block_until_ready(out3)
    np.testing.assert_allclose(np.asarray(out3), np.asarray(ref),
                               rtol=2e-2, atol=1e-1)

    print("KERNEL_OK")
</pallas_src>

<mosaic_0001>
module attributes {stable_mosaic.version = 11 : i64} {
  func.func @_arcmargin_kernel(%arg0: i32, %arg1: i32, %arg2: memref<16x1xi32, #tpu.memory_space<vmem>>, %arg3: memref<16x128xf32, #tpu.memory_space<vmem>>, %arg4: memref<128x128xf32, #tpu.memory_space<vmem>>, %arg5: memref<16x128xf32, #tpu.memory_space<vmem>>) attributes {dimension_semantics = [#tpu.dimension_semantics<parallel>, #tpu.dimension_semantics<parallel>], iteration_bounds = array<i64: 1, 2>, scalar_prefetch = 0 : i64, scratch_operands = 0 : i64, tpu.core_type = #tpu.core_type<tc>, window_params = [{transform_indices = @transform_0, window_bounds = array<i64: 16, 1>}, {transform_indices = @transform_1, window_bounds = array<i64: 16, 128>}, {transform_indices = @transform_2, window_bounds = array<i64: 128, 128>}, {transform_indices = @transform_3, window_bounds = array<i64: 16, 128>}]} {
    %c0 = arith.constant 0 : index
    %c0_0 = arith.constant 0 : index
    %0 = vector.load %arg3[%c0, %c0_0] : memref<16x128xf32, #tpu.memory_space<vmem>>, vector<16x128xf32>
    %c0_1 = arith.constant 0 : index
    %c0_2 = arith.constant 0 : index
    %1 = vector.load %arg4[%c0_1, %c0_2] : memref<128x128xf32, #tpu.memory_space<vmem>>, vector<128x128xf32>
    %2 = arith.mulf %1, %1 : vector<128x128xf32>
    %cst = arith.constant dense<0.000000e+00> : vector<128xf32>
    %3 = vector.multi_reduction <add>, %2, %cst [1] : vector<128x128xf32> to vector<128xf32>
    %4 = vector.shape_cast %3 : vector<128xf32> to vector<128x1xf32>
    %cst_3 = arith.constant 1.000000e-24 : f32
    %5 = vector.broadcast %cst_3 : f32 to vector<128x1xf32>
    %6 = arith.maximumf %4, %5 : vector<128x1xf32>
    %7 = math.rsqrt %6 : vector<128x1xf32>
    %8 = vector.broadcast %7 : vector<128x1xf32> to vector<128x128xf32>
    %9 = arith.mulf %1, %8 : vector<128x128xf32>
    %cst_4 = arith.constant dense<0.000000e+00> : vector<16x128xf32>
    %10 = tpu.matmul %0, %9, %cst_4 {dimension_numbers = #tpu.dot_dimension_numbers<[1], [1], [0], [0], [0, 0, 1, 0], [], []>} : vector<16x128xf32>, vector<128x128xf32>, vector<16x128xf32> -> vector<16x128xf32>
    %11 = arith.mulf %0, %0 : vector<16x128xf32>
    %cst_5 = arith.constant dense<0.000000e+00> : vector<16xf32>
    %12 = vector.multi_reduction <add>, %11, %cst_5 [1] : vector<16x128xf32> to vector<16xf32>
    %13 = vector.shape_cast %12 : vector<16xf32> to vector<16x1xf32>
    %cst_6 = arith.constant 1.000000e-24 : f32
    %14 = vector.broadcast %cst_6 : f32 to vector<16x1xf32>
    %15 = arith.maximumf %13, %14 : vector<16x1xf32>
    %16 = math.rsqrt %15 : vector<16x1xf32>
    %17 = vector.broadcast %16 : vector<16x1xf32> to vector<16x128xf32>
    %18 = arith.mulf %10, %17 : vector<16x128xf32>
    %19 = arith.mulf %18, %18 : vector<16x128xf32>
    %cst_7 = arith.constant 1.000000e+00 : f32
    %20 = vector.broadcast %cst_7 : f32 to vector<16x128xf32>
    %21 = arith.subf %20, %19 : vector<16x128xf32>
    %cst_8 = arith.constant 0.000000e+00 : f32
    %22 = vector.broadcast %cst_8 : f32 to vector<16x128xf32>
    %23 = arith.maximumf %21, %22 : vector<16x128xf32>
    %24 = math.sqrt %23 : vector<16x128xf32>
    %cst_9 = arith.constant 0.87758255 : f32
    %25 = vector.broadcast %cst_9 : f32 to vector<16x128xf32>
    %26 = arith.mulf %18, %25 : vector<16x128xf32>
    %cst_10 = arith.constant 0.47942555 : f32
    %27 = vector.broadcast %cst_10 : f32 to vector<16x128xf32>
    %28 = arith.mulf %24, %27 : vector<16x128xf32>
    %29 = arith.subf %26, %28 : vector<16x128xf32>
    %cst_11 = arith.constant -0.87758255 : f32
    %30 = vector.broadcast %cst_11 : f32 to vector<16x128xf32>
    %31 = arith.cmpf ogt, %18, %30 : vector<16x128xf32>
    %cst_12 = arith.constant 0.239712775 : f32
    %32 = vector.broadcast %cst_12 : f32 to vector<16x128xf32>
    %33 = arith.subf %18, %32 : vector<16x128xf32>
    %34 = arith.select %31, %29, %33 : vector<16x128xi1>, vector<16x128xf32>
    %c128_i32 = arith.constant 128 : i32
    %35 = arith.muli %arg1, %c128_i32 : i32
    %36 = tpu.iota {dimensions = array<i32: 1>} : vector<16x128xi32>
    %37 = vector.broadcast %35 : i32 to vector<16x128xi32>
    %38 = arith.addi %36, %37 : vector<16x128xi32>
    %c0_13 = arith.constant 0 : index
    %c0_14 = arith.constant 0 : index
    %39 = vector.load %arg2[%c0_13, %c0_14] : memref<16x1xi32, #tpu.memory_space<vmem>>, vector<16x1xi32>
    %40 = vector.broadcast %39 : vector<16x1xi32> to vector<16x128xi32>
    %41 = arith.cmpi eq, %38, %40 : vector<16x128xi32>
    %42 = arith.select %41, %34, %18 : vector<16x128xi1>, vector<16x128xf32>
    %cst_15 = arith.constant 3.000000e+01 : f32
    %43 = vector.broadcast %cst_15 : f32 to vector<16x128xf32>
    %44 = arith.mulf %42, %43 : vector<16x128xf32>
    %c0_16 = arith.constant 0 : index
    %c0_17 = arith.constant 0 : index
    %45 = vector.load %arg5[%c0_16, %c0_17] : memref<16x128xf32, #tpu.memory_space<vmem>>, vector<16x128xf32>
    tpu.vector_store %arg5[%c0_16, %c0_17], %44 {strides = array<i32>} : memref<16x128xf32, #tpu.memory_space<vmem>>, vector<16x128xf32>,
    return
  }
  func.func @transform_0(%arg0: i32, %arg1: i32) -> (i32, i32) {
    %c0_i32 = arith.constant 0 : i32
    %c0_i32_0 = arith.constant 0 : i32
    return %arg0, %c0_i32 : i32, i32
  }
  func.func @transform_1(%arg0: i32, %arg1: i32) -> (i32, i32) {
    %c0_i32 = arith.constant 0 : i32
    %c0_i32_0 = arith.constant 0 : i32
    return %arg0, %c0_i32 : i32, i32
  }
  func.func @transform_2(%arg0: i32, %arg1: i32) -> (i32, i32) {
    %c0_i32 = arith.constant 0 : i32
    %c0_i32_0 = arith.constant 0 : i32
    return %arg1, %c0_i32 : i32, i32
  }
  func.func @transform_3(%arg0: i32, %arg1: i32) -> (i32, i32) {
    %c0_i32 = arith.constant 0 : i32
    return %arg0, %arg1 : i32, i32
  }
}

</mosaic_0001>

<llo_original>
// kernel: tpu_custom_call.1
$region0: #{tpu_custom_call.1}
  #allocation0 [shape = 'u32[]', space=smem, size = 0x4, offset = 0x4, fixed_abs, tag = 'smem constant byte address 0x4 - core index']
  #allocation1 [shape = 'u32[144,128]{1,0:T(1,128)}', space=vmem, size = 0x12000, scoped, tag = 'internal scratch']
  %s0 = inlined_call_operand.vmem [shape: s32[16,1], index: 0, kind: input, shape index: {}]
  %s1 = inlined_call_operand.vmem [shape: f32[16,128], index: 1, kind: input, shape index: {}]
  %s2 = inlined_call_operand.hbm [shape: f32[256,128], index: 2, kind: input, shape index: {}]
  %s3 = inlined_call_operand.hbm [shape: f32[16,256], index: 3, kind: output, shape index: {}]
  %s4 = sld [smem:[#allocation0]]
  $region49: #{tpu_custom_call.1} parent=0
    _
  %s6 = ssub.s32 1, %s4
  %s7 = scalar_select 0, %s6, %s4
  $region1: #{tpu_custom_call.1} parent=0
    #allocation2 [shape = 'u8[131072]{0}', space=vmem, size = 0x20000, scoped, tag = 'input window, operand 2']
    #allocation3 [shape = 's32[2]{0}', space=sflag, size = 0x8, scoped, tag = 'scoped memory for tpu_custom_call.1']
    #allocation4 [shape = 's32[2]{0}', space=sflag, size = 0x8, scoped, tag = 'scoped memory for tpu_custom_call.1']
    #allocation5 [shape = 'u8[16384]{0}', space=vmem, size = 0x4000, scoped, tag = 'output window, operand 0']
    %8 = vsyncpa [#allocation3], 0
    %s9 = scalar_lea.sflag [#allocation3], 1
    %10 = vsyncpa %s9, 0
    %11 = vsyncpa [#allocation4], 0
    %s12 = scalar_lea.sflag [#allocation4], 1
    %13 = vsyncpa %s12, 0
    loop: start=0, step=1, limit=4
    $region2: #{tpu_custom_call.1} parent=1 // loop_pre_header
      _
    $region3: #{tpu_custom_call.1} parent=1 // loop_header
      %s15 = sphi 0, %s19
      %p16 = scmp.ge.s32.totalorder %s15, 4
      %s22 = sphi 0, %s34
      %s23 = sphi 0, %s30
      %s24 = sphi 0, %s22
      %s25 = sphi 0, %s23
      %s26 = sphi 0, %s24
      %s27 = sphi 0, %s25
      %s37 = sphi 0, %s39
      %s40 = sphi 0, %s37
      %s41 = sphi 0, %s40
      %s57 = sphi 0, %s41
      %s63 = sphi 0, %s65
      %s66 = sphi 0, %s63
      %s67 = sphi 0, %s66
      %s83 = sphi 0, %s67
      %s89 = sphi 0, %s91
      %s92 = sphi 0, %s89
      %s93 = sphi 0, %s92
      %s109 = sphi 0, %s93
      %s117 = sphi 0, %s119
      %s120 = sphi 0, %s117
      %s121 = sphi 0, %s120
      %s137 = sphi 0, %s121
    $region4: #{tpu_custom_call.1} parent=1 // loop_header_branch
      %18 = sbr.rel (%p16) target = $region8
    $region5: #{tpu_custom_call.1} parent=1 // loop_body
      %s20 = ssub.s32 %s15, 1
      %s21 = ssub.s32 %s15, 2
      %s28 = sadd.s32 1, %s23
      %p29 = scmp.ge.s32.totalorder %s28, 2
      %s30 = scalar_select %p29, 0, %s28
      %s31 = sadd.s32 1, %s22
      %s32 = scalar_select %p29, %s31, %s22
      %p33 = scmp.ge.s32.totalorder %s32, 1
      %s34 = scalar_select %p33, 0, %s32
      %s35 = ssub.s32 %s22, %s34
      %p36 = scmp.eq.s32.totalorder %s35, 0
      %s38 = sadd.s32 %s37, 1
      %s39 = scalar_select %p36, %s37, %s38
      %p42 = pneg %p36
      %p43 = scmp.eq.s32.totalorder %s15, 1
      %p44 = por %p42, %p43
      %p45 = scmp.ne.s32.totalorder %s37, %s40
      %p46 = scmp.eq.s32.totalorder %s15, 0
      %p47 = por %p45, %p46
      %p48 = scmp.ne.s32.totalorder %s37, %s40
      %p49 = scmp.eq.s32.totalorder %s20, 1
      %p50 = por %p48, %p49
      %p51 = scmp.ne.s32.totalorder %s40, %s41
      %p52 = scmp.eq.s32.totalorder %s20, 0
      %p53 = por %p51, %p52
      %p54 = scmp.ne.s32.totalorder %s40, %s41
      %p55 = scmp.eq.s32.totalorder %s21, 1
      %p56 = por %p54, %p55
      %p58 = scmp.ne.s32.totalorder %s41, %s57
      %p59 = scmp.eq.s32.totalorder %s21, 0
      %p60 = por %p58, %p59
      %s61 = ssub.s32 %s22, %s34
      %p62 = scmp.eq.s32.totalorder %s61, 0
      %s64 = sadd.s32 %s63, 1
      %s65 = scalar_select %p62, %s63, %s64
      %p68 = pneg %p62
      %p69 = scmp.eq.s32.totalorder %s15, 1
      %p70 = por %p68, %p69
      %p71 = scmp.ne.s32.totalorder %s63, %s66
      %p72 = scmp.eq.s32.totalorder %s15, 0
      %p73 = por %p71, %p72
      %p74 = scmp.ne.s32.totalorder %s63, %s66
      %p75 = scmp.eq.s32.totalorder %s20, 1
      %p76 = por %p74, %p75
      %p77 = scmp.ne.s32.totalorder %s66, %s67
      %p78 = scmp.eq.s32.totalorder %s20, 0
      %p79 = por %p77, %p78
      %p80 = scmp.ne.s32.totalorder %s66, %s67
      %p81 = scmp.eq.s32.totalorder %s21, 1
      %p82 = por %p80, %p81
      %p84 = scmp.ne.s32.totalorder %s67, %s83
      %p85 = scmp.eq.s32.totalorder %s21, 0
      %p86 = por %p84, %p85
      %s87 = ssub.s32 %s23, %s30
      %p88 = scmp.eq.s32.totalorder %s87, 0
      %s90 = sadd.s32 %s89, 1
      %s91 = scalar_select %p88, %s89, %s90
      %p94 = pneg %p88
      %p95 = scmp.eq.s32.totalorder %s15, 1
      %p96 = por %p94, %p95
      %p97 = scmp.ne.s32.totalorder %s89, %s92
      %p98 = scmp.eq.s32.totalorder %s15, 0
      %p99 = por %p97, %p98
      %p100 = scmp.ne.s32.totalorder %s89, %s92
      %p101 = scmp.eq.s32.totalorder %s20, 1
      %p102 = por %p100, %p101
      %p103 = scmp.ne.s32.totalorder %s92, %s93
      %p104 = scmp.eq.s32.totalorder %s20, 0
      %p105 = por %p103, %p104
      %p106 = scmp.ne.s32.totalorder %s92, %s93
      %p107 = scmp.eq.s32.totalorder %s21, 1
      %p108 = por %p106, %p107
      %p110 = scmp.ne.s32.totalorder %s93, %s109
      %p111 = scmp.eq.s32.totalorder %s21, 0
      %p112 = por %p110, %p111
      %s113 = ssub.s32 %s22, %s34
      %s114 = ssub.s32 %s23, %s30
      %s115 = sor.u32 %s113, %s114
      %p116 = scmp.eq.s32.totalorder %s115, 0
      %s118 = sadd.s32 %s117, 1
      %s119 = scalar_select %p116, %s117, %s118
      %p122 = pneg %p116
      %p123 = scmp.eq.s32.totalorder %s15, 1
      %p124 = por %p122, %p123
      %p125 = scmp.ne.s32.totalorder %s117, %s120
      %p126 = scmp.eq.s32.totalorder %s15, 0
      %p127 = por %p125, %p126
      %p128 = scmp.ne.s32.totalorder %s117, %s120
      %p129 = scmp.eq.s32.totalorder %s20, 1
      %p130 = por %p128, %p129
      %p131 = scmp.ne.s32.totalorder %s120, %s121
      %p132 = scmp.eq.s32.totalorder %s20, 0
      %p133 = por %p131, %p132
      %p134 = scmp.ne.s32.totalorder %s120, %s121
      %p135 = scmp.eq.s32.totalorder %s21, 1
      %p136 = por %p134, %p135
      %p138 = scmp.ne.s32.totalorder %s121, %s137
      %p139 = scmp.eq.s32.totalorder %s21, 0
      %p140 = por %p138, %p139
      %p141 = scmp.le.s32.totalorder 1, %s15
      %p142 = scmp.lt.s32.totalorder %s15, 3
      %p143 = pnand %p141, %p142
      %p144 = pneg %p143
      // Predicated region
      $region9: #{tpu_custom_call.1} parent=5 // pred_check
        _
      $region10: #{tpu_custom_call.1} parent=5 // pred_check_branch
        %146 = sbr.rel (%p143) target = $region12
      $region11: #{tpu_custom_call.1} parent=5 // pred_region
        %s147 = ssub.s32 %s15, 1
        // Predicated region
        $region13: #{tpu_custom_call.1} parent=11 // pred_check
          %p148 = pneg %p53
        $region14: #{tpu_custom_call.1} parent=11 // pred_check_branch
          %150 = sbr.rel (%p148) target = $region16
        $region15: #{tpu_custom_call.1} parent=11 // pred_region
          %s151 = smul.u32 2, %s24
          %p152 = scmp.lt.s32.totalorder %s151, 1
          %s153 = scalar_select %p152, %s151, 1
          %s154 = smul.addr %s153, 8
          %s155 = scalar_lea.vmem %s0, %s154
          %s156 = smul.u32 2, %s24
        $region16: #{tpu_custom_call.1} parent=11 // pred_fallthru
          _
        // Predicated region
        $region17: #{tpu_custom_call.1} parent=11 // pred_check
          %p157 = pneg %p79
        $region18: #{tpu_custom_call.1} parent=11 // pred_check_branch
          %159 = sbr.rel (%p157) target = $region20
        $region19: #{tpu_custom_call.1} parent=11 // pred_region
          %s160 = smul.u32 2, %s24
          %p161 = scmp.lt.s32.totalorder %s160, 1
          %s162 = scalar_select %p161, %s160, 1
          %s163 = smul.addr %s162, 8
          %s164 = scalar_lea.vmem %s1, %s163
          %s165 = smul.u32 2, %s24
        $region20: #{tpu_custom_call.1} parent=11 // pred_fallthru
          _
      $region12: #{tpu_custom_call.1} parent=5 // pred_fallthru
        _
      %p166 = scmp.lt.s32.totalorder %s15, 2
      // Predicated region
      $region21: #{tpu_custom_call.1} parent=5 // pred_check
        %p167 = pneg %p166
      $region22: #{tpu_custom_call.1} parent=5 // pred_check_branch
        %169 = sbr.rel (%p167) target = $region24
      $region23: #{tpu_custom_call.1} parent=5 // pred_region
        // Predicated region
        $region25: #{tpu_custom_call.1} parent=23 // pred_check
          %p170 = pneg %p99
        $region26: #{tpu_custom_call.1} parent=23 // pred_check_branch
          %172 = sbr.rel (%p170) target = $region28
        $region27: #{tpu_custom_call.1} parent=23 // pred_region
          %s173 = sand.u32 %s89, 1
          %s174 = scalar_lea.sflag [#allocation3], %s173
          %s175 = sand.u32 %s89, 1
          %s176 = smul.addr %s175, 128
          %s177 = scalar_lea.vmem [#allocation2], %s176
          %s178 = smul.u32 16, %s23
          %s180 = ssub.s32 2048, 2048
          %181 = vsyncadd %s174, %s180
          %s182 = smul.addr %s178, 128
          %s183 = scalar_lea.hbm %s2, %s182
          %s184 = sshll.u32 %s177, 4
          %s185 = int_to_ptr.vmem [resolvable:$true] %s184
          %190 = dma.hbm_to_vmem [thread:$0]  %s183, 2048, %s185, %s174, 128, 128, 8
        $region28: #{tpu_custom_call.1} parent=23 // pred_fallthru
          _
      $region24: #{tpu_custom_call.1} parent=5 // pred_fallthru
        _
      %p191 = scmp.le.s32.totalorder 1, %s15
      %p192 = scmp.lt.s32.totalorder %s15, 3
      %p193 = pnand %p191, %p192
      %p194 = pneg %p193
      // Predicated region
      $region29: #{tpu_custom_call.1} parent=5 // pred_check
        _
      $region30: #{tpu_custom_call.1} parent=5 // pred_check_branch
        %196 = sbr.rel (%p193) target = $region32
      $region31: #{tpu_custom_call.1} parent=5 // pred_region
        %s197 = ssub.s32 %s15, 1
        %s198 = sand.u32 %s92, 1
        %s199 = scalar_lea.sflag [#allocation3], %s198
        %s200 = sand.u32 %s92, 1
        %s201 = smul.addr %s200, 128
        %s202 = scalar_lea.vmem [#allocation2], %s201
        // Predicated region
        $region33: #{tpu_custom_call.1} parent=31 // pred_check
          %p203 = pneg %p105
        $region34: #{tpu_custom_call.1} parent=31 // pred_check_branch
          %205 = sbr.rel (%p203) target = $region36
        $region35: #{tpu_custom_call.1} parent=31 // pred_region
          %206 = dma.done %s199, 2048
        $region36: #{tpu_custom_call.1} parent=31 // pred_fallthru
          _
        %s207 = smul.u32 2, %s24
        %p208 = scmp.lt.s32.totalorder %s207, 1
        %s209 = scalar_select %p208, %s207, 1
        %s210 = smul.addr %s209, 8
        %s211 = scalar_lea.vmem %s0, %s210
        %p212 = pneg %p53
        %p213 = pneg %p50
        %s214 = smul.u32 2, %s24
        %p215 = scmp.lt.s32.totalorder %s214, 1
        %s216 = scalar_select %p215, %s214, 1
        %s217 = smul.addr %s216, 8
        %s218 = scalar_lea.vmem %s1, %s217
        %p219 = pneg %p79
        %p220 = pneg %p76
        %s221 = sand.u32 %s92, 1
        %s222 = scalar_lea.sflag [#allocation3], %s221
        %s223 = sand.u32 %s92, 1
        %s224 = smul.addr %s223, 128
        %s225 = scalar_lea.vmem [#allocation2], %s224
        %p226 = pneg %p105
        %p227 = pneg %p102
        %p228 = pneg %p133
        %p229 = pneg %p130
        %s230 = sand.u32 %s120, 1
        %s231 = scalar_lea.sflag [#allocation4], %s230
        %s232 = sand.u32 %s120, 1
        %s233 = smul.addr %s232, 16
        %s234 = scalar_lea.vmem [#allocation5], %s233
        %s235 = smul.u32 2, %s24
        %p236 = scmp.lt.s32.totalorder %s235, 1
        %s237 = scalar_select %p236, %s235, 1
        %s238 = smul.addr %s237, 8
        %s239 = scalar_lea.vmem %s0, %s238
        %s240 = smul.u32 2, %s24
        %s241 = smul.u32 2, %s24
        %p242 = scmp.lt.s32.totalorder %s241, 1
        %s243 = scalar_select %p242, %s241, 1
        %s244 = smul.addr %s243, 8
        %s245 = scalar_lea.vmem %s1, %s244
        %s246 = smul.u32 2, %s24
        %s247 = smul.u32 16, %s25
        %s248 = smul.u32 2, %s24
        %v249 = vld [vmem:[%s245] sm:$0xff]
        %v250 = vld [vmem:[%s245 + $0x8] sm:$0xff]
        %v251 = vld [vmem:[%s202] sm:$0xff]
        %v252 = vld [vmem:[%s202 + $0x8] sm:$0xff]
        %v253 = vld [vmem:[%s202 + $0x10] sm:$0xff]
        %v254 = vld [vmem:[%s202 + $0x18] sm:$0xff]
        %v255 = vld [vmem:[%s202 + $0x20] sm:$0xff]
        %v256 = vld [vmem:[%s202 + $0x28] sm:$0xff]
        %v257 = vld [vmem:[%s202 + $0x30] sm:$0xff]
        %v258 = vld [vmem:[%s202 + $0x38] sm:$0xff]
        %v259 = vld [vmem:[%s202 + $0x40] sm:$0xff]
        %v260 = vld [vmem:[%s202 + $0x48] sm:$0xff]
        %v261 = vld [vmem:[%s202 + $0x50] sm:$0xff]
        %v262 = vld [vmem:[%s202 + $0x58] sm:$0xff]
        %v263 = vld [vmem:[%s202 + $0x60] sm:$0xff]
        %v264 = vld [vmem:[%s202 + $0x68] sm:$0xff]
        %v265 = vld [vmem:[%s202 + $0x70] sm:$0xff]
        %v266 = vld [vmem:[%s202 + $0x78] sm:$0xff]
        %v267 = vmul.f32 %v251, %v251
        %v268 = vmul.f32 %v252, %v252
        %v269 = vmul.f32 %v253, %v253
        %v270 = vmul.f32 %v254, %v254
        %v271 = vmul.f32 %v255, %v255
        %v272 = vmul.f32 %v256, %v256
        %v273 = vmul.f32 %v257, %v257
        %v274 = vmul.f32 %v258, %v258
        %v275 = vmul.f32 %v259, %v259
        %v276 = vmul.f32 %v260, %v260
        %v277 = vmul.f32 %v261, %v261
        %v278 = vmul.f32 %v262, %v262
        %v279 = vmul.f32 %v263, %v263
        %v280 = vmul.f32 %v264, %v264
        %v281 = vmul.f32 %v265, %v265
        %v282 = vmul.f32 %v266, %v266
        %283 = vadd.xlane.f32.xlu0 %v267
        %v284 = vpop.xlane.xlu0 %283
        %285 = vadd.xlane.f32.xlu0 %v268
        %v286 = vpop.xlane.xlu0 %285
        %287 = vadd.xlane.f32.xlu0 %v269
        %v288 = vpop.xlane.xlu0 %287
        %289 = vadd.xlane.f32.xlu0 %v270
        %v290 = vpop.xlane.xlu0 %289
        %291 = vadd.xlane.f32.xlu0 %v271
        %v292 = vpop.xlane.xlu0 %291
        %293 = vadd.xlane.f32.xlu0 %v272
        %v294 = vpop.xlane.xlu0 %293
        %295 = vadd.xlane.f32.xlu0 %v273
        %v296 = vpop.xlane.xlu0 %295
        %297 = vadd.xlane.f32.xlu0 %v274
        %v298 = vpop.xlane.xlu0 %297
        %299 = vadd.xlane.f32.xlu0 %v275
        %v300 = vpop.xlane.xlu0 %299
        %301 = vadd.xlane.f32.xlu0 %v276
        %v302 = vpop.xlane.xlu0 %301
        %303 = vadd.xlane.f32.xlu0 %v277
        %v304 = vpop.xlane.xlu0 %303
        %305 = vadd.xlane.f32.xlu0 %v278
        %v306 = vpop.xlane.xlu0 %305
        %307 = vadd.xlane.f32.xlu0 %v279
        %v308 = vpop.xlane.xlu0 %307
        %309 = vadd.xlane.f32.xlu0 %v280
        %v310 = vpop.xlane.xlu0 %309
        %311 = vadd.xlane.f32.xlu0 %v281
        %v312 = vpop.xlane.xlu0 %311
        %313 = vadd.xlane.f32.xlu0 %v282
        %v314 = vpop.xlane.xlu0 %313
        %v315 = vmax.f32 %v284, 1e-24
        %v316 = vmax.f32 %v286, 1e-24
        %v317 = vmax.f32 %v288, 1e-24
        %v318 = vmax.f32 %v290, 1e-24
        %v319 = vmax.f32 %v292, 1e-24
        %v320 = vmax.f32 %v294, 1e-24
        %v321 = vmax.f32 %v296, 1e-24
        %v322 = vmax.f32 %v298, 1e-24
        %v323 = vmax.f32 %v300, 1e-24
        %v324 = vmax.f32 %v302, 1e-24
        %v325 = vmax.f32 %v304, 1e-24
        %v326 = vmax.f32 %v306, 1e-24
        %v327 = vmax.f32 %v308, 1e-24
        %v328 = vmax.f32 %v310, 1e-24
        %v329 = vmax.f32 %v312, 1e-24
        %v330 = vmax.f32 %v314, 1e-24
        %v331 = vrsqrt.pop %v315
        %v332 = vrsqrt.pop %v316
        %v333 = vrsqrt.pop %v317
        %v334 = vrsqrt.pop %v318
        %v335 = vrsqrt.pop %v319
        %v336 = vrsqrt.pop %v320
        %v337 = vrsqrt.pop %v321
        %v338 = vrsqrt.pop %v322
        %v339 = vrsqrt.pop %v323
        %v340 = vrsqrt.pop %v324
        %v341 = vrsqrt.pop %v325
        %v342 = vrsqrt.pop %v326
        %v343 = vrsqrt.pop %v327
        %v344 = vrsqrt.pop %v328
        %v345 = vrsqrt.pop %v329
        %v346 = vrsqrt.pop %v330
        %v347 = vmul.f32 %v251, %v331
        %v348 = vmul.f32 %v252, %v332
        %v349 = vmul.f32 %v253, %v333
        %v350 = vmul.f32 %v254, %v334
        %v351 = vmul.f32 %v255, %v335
        %v352 = vmul.f32 %v256, %v336
        %v353 = vmul.f32 %v257, %v337
        %v354 = vmul.f32 %v258, %v338
        %v355 = vmul.f32 %v259, %v339
        %v356 = vmul.f32 %v260, %v340
        %v357 = vmul.f32 %v261, %v341
        %v358 = vmul.f32 %v262, %v342
        %v359 = vmul.f32 %v263, %v343
        %v360 = vmul.f32 %v264, %v344
        %v361 = vmul.f32 %v265, %v345
        %v362 = vmul.f32 %v266, %v346
        %363 = vmatprep.subr.mxu0 0.0
        %364 = vmatpush1.xpose.msra.mxu0 %v347
        %365 = vmatprep.subr.mxu0 0.0
        %366 = vmatpush1.xpose.msra.mxu0 %v348
        %367 = vmatprep.subr.mxu0 0.0
        %368 = vmatpush1.xpose.msra.mxu0 %v349
        %369 = vmatprep.subr.mxu0 0.0
        %370 = vmatpush1.xpose.msra.mxu0 %v350
        %371 = vmatprep.subr.mxu0 0.0
        %372 = vmatpush1.xpose.msra.mxu0 %v351
        %373 = vmatprep.subr.mxu0 0.0
        %374 = vmatpush1.xpose.msra.mxu0 %v352
        %375 = vmatprep.subr.mxu0 0.0
        %376 = vmatpush1.xpose.msra.mxu0 %v353
        %377 = vmatprep.subr.mxu0 0.0
        %378 = vmatpush1.xpose.msra.mxu0 %v354
        %379 = vmatprep.subr.mxu0 0.0
        %380 = vmatpush1.xpose.msra.mxu0 %v355
        %381 = vmatprep.subr.mxu0 0.0
        %382 = vmatpush1.xpose.msra.mxu0 %v356
        %383 = vmatprep.subr.mxu0 0.0
        %384 = vmatpush1.xpose.msra.mxu0 %v357
        %385 = vmatprep.subr.mxu0 0.0
        %386 = vmatpush1.xpose.msra.mxu0 %v358
        %387 = vmatprep.subr.mxu0 0.0
        %388 = vmatpush1.xpose.msra.mxu0 %v359
        %389 = vmatprep.subr.mxu0 0.0
        %390 = vmatpush1.xpose.msra.mxu0 %v360
        %391 = vmatprep.subr.mxu0 0.0
        %392 = vmatpush1.xpose.msra.mxu0 %v361
        %393 = vmatprep.subr.mxu0 0.0
        %394 = vmatpush1.xpose.msra.mxu0 %v362
        %395 = vmatprep.subr.mxu0 0.0
        %396 = vmatpush1.xpose.msra.mxu0 0.0
        %397 = vmatprep.subr.mxu0 0.0
        %398 = vmatpush1.xpose.msra.mxu0 0.0
        %399 = vmatprep.subr.mxu0 0.0
        %400 = vmatpush1.xpose.msra.mxu0 0.0
        %401 = vmatprep.subr.mxu0 0.0
        %402 = vmatpush1.xpose.msra.mxu0 0.0
        %403 = vmatprep.subr.mxu0 0.0
        %404 = vmatpush1.xpose.msra.mxu0 0.0
        %405 = vmatprep.subr.mxu0 0.0
        %406 = vmatpush1.xpose.msra.mxu0 0.0
        %407 = vmatprep.subr.mxu0 0.0
        %408 = vmatpush1.xpose.msra.mxu0 0.0
        %409 = vmatprep.subr.mxu0 0.0
        %410 = vmatpush1.xpose.msra.mxu0 0.0
        %411 = vmatprep.subr.mxu0 0.0
        %412 = vmatpush1.xpose.msra.mxu0 0.0
        %413 = vmatprep.subr.mxu0 0.0
        %414 = vmatpush1.xpose.msra.mxu0 0.0
        %415 = vmatprep.subr.mxu0 0.0
        %416 = vmatpush1.xpose.msra.mxu0 0.0
        %417 = vmatprep.subr.mxu0 0.0
        %418 = vmatpush1.xpose.msra.mxu0 0.0
        %419 = vmatprep.subr.mxu0 0.0
        %420 = vmatpush1.xpose.msra.mxu0 0.0
        %421 = vmatprep.subr.mxu0 0.0
        %422 = vmatpush1.xpose.msra.mxu0 0.0
        %423 = vmatprep.subr.mxu0 0.0
        %424 = vmatpush1.xpose.msra.mxu0 0.0
        %425 = vmatprep.subr.mxu0 0.0
        %426 = vmatpush1.xpose.msra.mxu0 0.0
        %427 = vmatprep.mubr.f32.mxu0 0.0
        %428 = vmatmul.mubr.f32.gmra.mrb[0].mxu0 %v249
        %v429 = vpop.f32.mrb[0].mxu0
        %v430 = vadd.f32 0.0, %v429
        %v431 = vpop.f32.mrb[0].mxu0
        %432 = vmatprep.mubr.f32.mxu0 0.0
        %433 = vmatmul.mubr.f32.gmra.mrb[0].mxu0 %v250
        %v434 = vpop.f32.mrb[0].mxu0
        %v435 = vadd.f32 0.0, %v434
        %v436 = vpop.f32.mrb[0].mxu0
        %437 = vdwg.mxu0
        %v438 = vmul.f32 %v249, %v249
        %v439 = vmul.f32 %v250, %v250
        %440 = vadd.xlane.f32.xlu0 %v438
        %v441 = vpop.xlane.xlu0 %440
        %442 = vadd.xlane.f32.xlu0 %v439
        %v443 = vpop.xlane.xlu0 %442
        %v444 = vmax.f32 %v441, 1e-24
        %v445 = vmax.f32 %v443, 1e-24
        %v446 = vrsqrt.pop %v444
        %v447 = vrsqrt.pop %v445
        %v448 = vmul.f32 %v430, %v446
        %v449 = vmul.f32 %v435, %v447
        %v450 = vmul.f32 %v448, %v448
        %v451 = vmul.f32 %v449, %v449
        %v452 = vsub.f32 1.0, %v450
        %v453 = vsub.f32 1.0, %v451
        %v454 = vmax.f32 %v452, 0.0
        %v455 = vmax.f32 %v453, 0.0
        %v456 = vrsqrt.pop %v454
        %v457 = vmul.f32 %v454, %v456
        %vm458 = vcmp.eq.f32.partialorder %v454, inf
        %v459 = vsel %vm458, %v454, %v457
        %vm460 = vcmp.eq.f32.partialorder %v454, 0.0
        %v461 = vand.u32 %v454, 2147483648
        %v462 = vsel %vm460, %v461, %v459
        %v463 = vrsqrt.pop %v455
        %v464 = vmul.f32 %v455, %v463
        %vm465 = vcmp.eq.f32.partialorder %v455, inf
        %v466 = vsel %vm465, %v455, %v464
        %vm467 = vcmp.eq.f32.partialorder %v455, 0.0
        %v468 = vand.u32 %v455, 2147483648
        %v469 = vsel %vm467, %v468, %v466
        %v470 = vmul.f32 %v448, 0.87758255
        %v471 = vmul.f32 %v449, 0.87758255
        %v472 = vmul.f32 %v462, 0.47942555
        %v473 = vmul.f32 %v469, 0.47942555
        %v474 = vsub.f32 %v470, %v472
        %v475 = vsub.f32 %v471, %v473
        %vm476 = vcmp.gt.f32.partialorder %v448, -0.87758255
        %vm477 = vcmp.gt.f32.partialorder %v449, -0.87758255
        %v478 = vsub.f32 %v448, 0.23971277
        %v479 = vsub.f32 %v449, 0.23971277
        %v480 = vsel %vm476, %v474, %v478
        %v481 = vsel %vm477, %v475, %v479
        %s482 = smul.u32 %s25, 128
        %v483 = vlaneseq
        %v484 = vand.u32 %v483, 127
        %v485 = vstv %s482
        %v486 = vadd.s32 %v484, %v485
        %v487 = vld [vmem:[%s239] sm:$0xff]
        %v488 = vld [vmem:[%s239 + $0x8] sm:$0xff]
        %489 = vset.pattern.permute.xlu0 0
        %490 = vperm.xlu0 %489, %v487
        %v491 = vpop.permute.xlu0 %490
        %492 = vset.pattern.permute.xlu0 0
        %493 = vperm.xlu0 %492, %v488
        %v494 = vpop.permute.xlu0 %493
        %vm495 = vcmp.eq.s32.totalorder %v486, %v491
        %vm496 = vcmp.eq.s32.totalorder %v486, %v494
        %v497 = vsel %vm495, %v480, %v448
        %v498 = vsel %vm496, %v481, %v449
        %v499 = vmul.f32 %v497, 30.0
        %v500 = vmul.f32 %v498, 30.0
        %501 = vst [vmem:[%s234] sm:$0xff] %v499
        %502 = vst [vmem:[%s234 + $0x8] sm:$0xff] %v500
        %s503 = sand.u32 %s120, 1
        %s504 = scalar_lea.sflag [#allocation4], %s503
        %s505 = sand.u32 %s120, 1
        %s506 = smul.addr %s505, 16
        %s507 = scalar_lea.vmem [#allocation5], %s506
        // Predicated region
        $region37: #{tpu_custom_call.1} parent=31 // pred_check
          %p508 = pneg %p130
        $region38: #{tpu_custom_call.1} parent=31 // pred_check_branch
          %510 = sbr.rel (%p508) target = $region40
        $region39: #{tpu_custom_call.1} parent=31 // pred_region
          %s511 = smul.u32 2, %s24
          %s513 = ssub.s32 256, 256
          %514 = vsyncadd %s504, %s513
          %s515 = smul.addr %s511, 2
          %s516 = sadd.s32 %s25, %s515
          %s517 = smul.addr %s516, 128
          %s518 = scalar_lea.hbm %s3, %s517
          %s519 = sshll.u32 %s507, 4
          %s520 = int_to_ptr.vmem [resolvable:$true] %s519
          %525 = dma.vmem_to_hbm [thread:$0]  %s520, 256, %s518, %s504, 128, 256, 8
        $region40: #{tpu_custom_call.1} parent=31 // pred_fallthru
          _
      $region32: #{tpu_custom_call.1} parent=5 // pred_fallthru
        _
      %p526 = scmp.le.s32.totalorder 2, %s15
      // Predicated region
      $region41: #{tpu_custom_call.1} parent=5 // pred_check
        %p527 = pneg %p526
      $region42: #{tpu_custom_call.1} parent=5 // pred_check_branch
        %529 = sbr.rel (%p527) target = $region44
      $region43: #{tpu_custom_call.1} parent=5 // pred_region
        %s530 = ssub.s32 %s15, 2
        // Predicated region
        $region45: #{tpu_custom_call.1} parent=43 // pred_check
          %p531 = pneg %p136
        $region46: #{tpu_custom_call.1} parent=43 // pred_check_branch
          %533 = sbr.rel (%p531) target = $region48
        $region47: #{tpu_custom_call.1} parent=43 // pred_region
          %s534 = sand.u32 %s121, 1
          %s535 = scalar_lea.sflag [#allocation4], %s534
          %s536 = sand.u32 %s121, 1
          %s537 = smul.addr %s536, 16
          %s538 = scalar_lea.vmem [#allocation5], %s537
          %539 = dma.done %s535, 256
        $region48: #{tpu_custom_call.1} parent=43 // pred_fallthru
          _
      $region44: #{tpu_custom_call.1} parent=5 // pred_fallthru
        _
    $region6: #{tpu_custom_call.1} parent=1 // loop_footer
      %s19 = sadd.s32 1, %s15
    $region7: #{tpu_custom_call.1} parent=1 // loop_footer_branch
      %14 = sbr.rel target = $region3
    $region8: #{tpu_custom_call.1} parent=1 // loop_exit
      _
    %540 = vsyncpa [#allocation3], 1
    %s541 = scalar_lea.sflag [#allocation3], 1
    %542 = vsyncpa %s541, 1
    %543 = vsyncpa [#allocation4], 1
    %s544 = scalar_lea.sflag [#allocation4], 1
    %545 = vsyncpa %s544, 1

</llo_original>
